<compile_context>
chip_gen: v6e
topology: v6e:2x2x1
jax: 0.10.0
libtpu: 0.0.40
codegen_flags: <defaults>
</compile_context>

<pallas_src>
import functools

import jax
import jax.numpy as jnp
from jax import lax
from jax.experimental import pallas as pl
from jax.experimental.pallas import tpu as pltpu

LANE = 128
MAX_BLOCK_ROWS = 1024       # (1024, 128) f32 block = 512 KiB per input


def _focal_kernel(pred_ref, gt_ref, loss_ref, npos_ref, *,
                  total, block_rows, steps_per_core, needs_mask):
    """Elementwise focal-loss terms, accumulated into block-shaped outputs.

    pred_ref, gt_ref   : (block_rows, LANE) VMEM tiles of the current step.
    loss_ref, npos_ref : (block_rows, LANE) VMEM-resident accumulators
                         (one slab per core-split, output-accumulator pattern).
    """
    c = pl.program_id(0)          # core-split ("parallel") axis
    i = pl.program_id(1)          # streaming  ("arbitrary") axis

    @pl.when(i == 0)
    def _():
        loss_ref[...] = jnp.zeros_like(loss_ref)
        npos_ref[...] = jnp.zeros_like(npos_ref)

    pred = pred_ref[...].astype(jnp.float32)
    gt = gt_ref[...].astype(jnp.float32)

    if needs_mask:
        # Logical (unclamped) block index -> global element index; elements
        # past `total` (tail padding / OOB rows / clamped duplicate blocks)
        # are replaced by sentinels that contribute exactly zero.
        lb = c * steps_per_core + i
        row = lax.broadcasted_iota(jnp.int32, (block_rows, LANE), 0)
        col = lax.broadcasted_iota(jnp.int32, (block_rows, LANE), 1)
        elem = (lb * block_rows + row) * LANE + col
        valid = elem < total
        pred = jnp.where(valid, pred, 0.5)   # finite log
        gt = jnp.where(valid, gt, 2.0)       # pos_inds = neg_inds = 0

    pos = gt == 1.0
    pos_f = pos.astype(jnp.float32)
    neg_f = (gt < 1.0).astype(jnp.float32)

    one_m_pred = 1.0 - pred
    g = 1.0 - gt
    neg_w = g * g
    neg_w = neg_w * neg_w                     # (1 - gt)^4

    # Single log shared by both (mutually exclusive) terms.
    x = jnp.where(pos, pred, one_m_pred)
    logx = jnp.log(x)
    weight = pos_f * one_m_pred * one_m_pred + neg_f * neg_w * pred * pred

    loss_ref[...] += logx * weight            # pos_loss + neg_loss, elementwise
    npos_ref[...] += pos_f


def simple_focal_loss(pred, gt):
    """Pallas implementation of SimpleFocalLoss.forward(out, target)."""
    assert pred.shape == gt.shape

    # Keep bf16 in HBM (half the bytes, widened in-kernel); everything else
    # is computed in f32 exactly like the PyTorch module.
    keep_bf16 = pred.dtype == jnp.bfloat16 and gt.dtype == jnp.bfloat16
    if not keep_bf16:
        pred = pred.astype(jnp.float32)
        gt = gt.astype(jnp.float32)
    sub = 16 if keep_bf16 else 8              # sublane granularity

    pred = pred.reshape(-1)
    gt = gt.reshape(-1)
    total = int(pred.shape[0])

    rows = pl.cdiv(total, LANE)
    rows_p = ((rows + sub - 1) // sub) * sub
    padded_total = rows_p * LANE
    if padded_total != total:
        # TODO(synk): only taken when numel isn't a multiple of LANE*sub; this
        # path costs one extra HBM copy. Aligned heatmaps are copy-free.
        pred = jnp.pad(pred, (0, padded_total - total))
        gt = jnp.pad(gt, (0, padded_total - total))
    pred2 = pred.reshape(rows_p, LANE)
    gt2 = gt.reshape(rows_p, LANE)

    block_rows = min(MAX_BLOCK_ROWS, rows_p)
    steps_total = pl.cdiv(rows_p, block_rows)
    num_splits = 2 if steps_total >= 2 else 1      # use both TCs on v7x
    steps_per_core = pl.cdiv(steps_total, num_splits)
    # Masking is only compiled in when the logical grid over-covers `total`
    # (tail pad, ragged last block, or clamped duplicate blocks).
    needs_mask = (num_splits * steps_per_core * block_rows * LANE) != total
    last_block = steps_total - 1

    def in_map(c, i):
        # Clamp so a core that runs out of work re-reads the last real block;
        # the in-kernel validity mask zeroes its contribution.
        return (jnp.minimum(c * steps_per_core + i, last_block), 0)

    kernel = functools.partial(
        _focal_kernel,
        total=total,
        block_rows=block_rows,
        steps_per_core=steps_per_core,
        needs_mask=needs_mask,
    )

    acc_shape = jax.ShapeDtypeStruct((num_splits * block_rows, LANE),
                                     jnp.float32)

    loss_acc, npos_acc = pl.pallas_call(
        kernel,
        out_shape=(acc_shape, acc_shape),
        grid_spec=pltpu.PrefetchScalarGridSpec(
            num_scalar_prefetch=0,
            grid=(num_splits, steps_per_core),
            in_specs=[
                pl.BlockSpec((block_rows, LANE), in_map),
                pl.BlockSpec((block_rows, LANE), in_map),
            ],
            out_specs=[
                pl.BlockSpec((block_rows, LANE), lambda c, i: (c, 0)),
                pl.BlockSpec((block_rows, LANE), lambda c, i: (c, 0)),
            ],
        ),
        compiler_params=pltpu.CompilerParams(
            dimension_semantics=("parallel", "arbitrary")),
    )(pred2, gt2)

    # Tiny final reduction + num_pos==0 handling stays in JAX glue.
    loss_sum = jnp.sum(loss_acc)              # pos_loss + neg_loss
    num_pos = jnp.sum(npos_acc)
    # num_pos == 0  =>  pos_loss == 0, so -(pos+neg)/max(num_pos,1) == -neg.
    return -loss_sum / jnp.maximum(num_pos, 1.0)


def _reference_loss(pred, gt):
    """Pure-JAX reference mirroring the PyTorch _neg_loss."""
    pred = pred.astype(jnp.float32)
    gt = gt.astype(jnp.float32)
    pos_inds = (gt == 1.0).astype(jnp.float32)
    neg_inds = (gt < 1.0).astype(jnp.float32)
    neg_weights = (1.0 - gt) ** 4
    pos_loss = jnp.sum(jnp.log(pred) * (1.0 - pred) ** 2 * pos_inds)
    neg_loss = jnp.sum(jnp.log(1.0 - pred) * pred ** 2 * neg_weights * neg_inds)
    num_pos = jnp.sum(pos_inds)
    return jnp.where(num_pos == 0,
                     -neg_loss,
                     -(pos_loss + neg_loss) / jnp.where(num_pos == 0, 1.0,
                                                        num_pos))


if __name__ == "__main__":
    key = jax.random.PRNGKey(0)
    k1, k2, k3 = jax.random.split(key, 3)

    B, C, H, W = 2, 4, 16, 16
    # "out" is a heatmap prediction in (0, 1) (post-sigmoid).
    out = jax.nn.sigmoid(jax.random.normal(k1, (B, C, H, W), jnp.float32))
    # "target" is a gaussian-like heatmap in [0, 1) with a few exact 1.0 peaks.
    target = jax.random.uniform(k2, (B, C, H, W), jnp.float32, 0.0, 0.95)
    peak_mask = jax.random.uniform(k3, (B, C, H, W)) > 0.98
    target = jnp.where(peak_mask, 1.0, target)

    loss = simple_focal_loss(out, target)
    jax.block_until_ready(loss)

    ref = _reference_loss(out, target)
    assert jnp.allclose(loss, ref, rtol=1e-4, atol=1e-5), (loss, ref)

    print("KERNEL_OK")
</pallas_src>

<mosaic_0001>
module attributes {stable_mosaic.version = 11 : i64} {
  func.func @_focal_kernel(%arg0: i32, %arg1: i32, %arg2: memref<16x128xf32, #tpu.memory_space<vmem>>, %arg3: memref<16x128xf32, #tpu.memory_space<vmem>>, %arg4: memref<16x128xf32, #tpu.memory_space<vmem>>, %arg5: memref<16x128xf32, #tpu.memory_space<vmem>>) attributes {dimension_semantics = [#tpu.dimension_semantics<parallel>, #tpu.dimension_semantics<arbitrary>], iteration_bounds = array<i64: 1, 1>, scalar_prefetch = 0 : i64, scratch_operands = 0 : i64, tpu.core_type = #tpu.core_type<tc>, window_params = [{transform_indices = @transform_0, window_bounds = array<i64: 16, 128>}, {transform_indices = @transform_1, window_bounds = array<i64: 16, 128>}, {transform_indices = @transform_2, window_bounds = array<i64: 16, 128>}, {transform_indices = @transform_3, window_bounds = array<i64: 16, 128>}]} {
    %c0_i32 = arith.constant 0 : i32
    %0 = arith.cmpi eq, %arg1, %c0_i32 : i32
    %1 = arith.extui %0 : i1 to i32
    %c0_i32_0 = arith.constant 0 : i32
    %2 = arith.cmpi ne, %1, %c0_i32_0 : i32
    scf.if %2 {
      %cst_15 = arith.constant 0.000000e+00 : f32
      %34 = vector.broadcast %cst_15 : f32 to vector<16x128xf32>
      %c0_16 = arith.constant 0 : index
      %c0_17 = arith.constant 0 : index
      %35 = vector.load %arg4[%c0_16, %c0_17] : memref<16x128xf32, #tpu.memory_space<vmem>>, vector<16x128xf32>
      tpu.vector_store %arg4[%c0_16, %c0_17], %34 {strides = array<i32>} : memref<16x128xf32, #tpu.memory_space<vmem>>, vector<16x128xf32>,
      %cst_18 = arith.constant 0.000000e+00 : f32
      %36 = vector.broadcast %cst_18 : f32 to vector<16x128xf32>
      %c0_19 = arith.constant 0 : index
      %c0_20 = arith.constant 0 : index
      %37 = vector.load %arg5[%c0_19, %c0_20] : memref<16x128xf32, #tpu.memory_space<vmem>>, vector<16x128xf32>
      tpu.vector_store %arg5[%c0_19, %c0_20], %36 {strides = array<i32>} : memref<16x128xf32, #tpu.memory_space<vmem>>, vector<16x128xf32>,
    } else {
    }
    %c0 = arith.constant 0 : index
    %c0_1 = arith.constant 0 : index
    %3 = vector.load %arg2[%c0, %c0_1] : memref<16x128xf32, #tpu.memory_space<vmem>>, vector<16x128xf32>
    %c0_2 = arith.constant 0 : index
    %c0_3 = arith.constant 0 : index
    %4 = vector.load %arg3[%c0_2, %c0_3] : memref<16x128xf32, #tpu.memory_space<vmem>>, vector<16x128xf32>
    %cst = arith.constant 1.000000e+00 : f32
    %5 = vector.broadcast %cst : f32 to vector<16x128xf32>
    %6 = arith.cmpf oeq, %4, %5 : vector<16x128xf32>
    %7 = arith.extui %6 : vector<16x128xi1> to vector<16x128xi32>
    %8 = arith.sitofp %7 : vector<16x128xi32> to vector<16x128xf32>
    %cst_4 = arith.constant 1.000000e+00 : f32
    %9 = vector.broadcast %cst_4 : f32 to vector<16x128xf32>
    %10 = arith.cmpf olt, %4, %9 : vector<16x128xf32>
    %11 = arith.extui %10 : vector<16x128xi1> to vector<16x128xi32>
    %12 = arith.sitofp %11 : vector<16x128xi32> to vector<16x128xf32>
    %cst_5 = arith.constant 1.000000e+00 : f32
    %13 = vector.broadcast %cst_5 : f32 to vector<16x128xf32>
    %14 = arith.subf %13, %3 : vector<16x128xf32>
    %cst_6 = arith.constant 1.000000e+00 : f32
    %15 = vector.broadcast %cst_6 : f32 to vector<16x128xf32>
    %16 = arith.subf %15, %4 : vector<16x128xf32>
    %17 = arith.mulf %16, %16 : vector<16x128xf32>
    %18 = arith.mulf %17, %17 : vector<16x128xf32>
    %19 = arith.select %6, %3, %14 : vector<16x128xi1>, vector<16x128xf32>
    %20 = math.log %19 : vector<16x128xf32>
    %21 = arith.mulf %8, %14 : vector<16x128xf32>
    %22 = arith.mulf %21, %14 : vector<16x128xf32>
    %23 = arith.mulf %12, %18 : vector<16x128xf32>
    %24 = arith.mulf %23, %3 : vector<16x128xf32>
    %25 = arith.mulf %24, %3 : vector<16x128xf32>
    %26 = arith.addf %22, %25 : vector<16x128xf32>
    %c0_7 = arith.constant 0 : index
    %c0_8 = arith.constant 0 : index
    %27 = vector.load %arg4[%c0_7, %c0_8] : memref<16x128xf32, #tpu.memory_space<vmem>>, vector<16x128xf32>
    %28 = arith.mulf %20, %26 : vector<16x128xf32>
    %29 = arith.addf %27, %28 : vector<16x128xf32>
    %c0_9 = arith.constant 0 : index
    %c0_10 = arith.constant 0 : index
    %30 = vector.load %arg4[%c0_9, %c0_10] : memref<16x128xf32, #tpu.memory_space<vmem>>, vector<16x128xf32>
    tpu.vector_store %arg4[%c0_9, %c0_10], %29 {strides = array<i32>} : memref<16x128xf32, #tpu.memory_space<vmem>>, vector<16x128xf32>,
    %c0_11 = arith.constant 0 : index
    %c0_12 = arith.constant 0 : index
    %31 = vector.load %arg5[%c0_11, %c0_12] : memref<16x128xf32, #tpu.memory_space<vmem>>, vector<16x128xf32>
    %32 = arith.addf %31, %8 : vector<16x128xf32>
    %c0_13 = arith.constant 0 : index
    %c0_14 = arith.constant 0 : index
    %33 = vector.load %arg5[%c0_13, %c0_14] : memref<16x128xf32, #tpu.memory_space<vmem>>, vector<16x128xf32>
    tpu.vector_store %arg5[%c0_13, %c0_14], %32 {strides = array<i32>} : memref<16x128xf32, #tpu.memory_space<vmem>>, vector<16x128xf32>,
    return
  }
  func.func @transform_0(%arg0: i32, %arg1: i32) -> (i32, i32) {
    %c1_i32 = arith.constant 1 : i32
    %0 = arith.muli %arg0, %c1_i32 : i32
    %1 = arith.addi %0, %arg1 : i32
    %c0_i32 = arith.constant 0 : i32
    %2 = arith.minsi %1, %c0_i32 : i32
    %c0_i32_0 = arith.constant 0 : i32
    %c0_i32_1 = arith.constant 0 : i32
    return %2, %c0_i32_0 : i32, i32
  }
  func.func @transform_1(%arg0: i32, %arg1: i32) -> (i32, i32) {
    %c1_i32 = arith.constant 1 : i32
    %0 = arith.muli %arg0, %c1_i32 : i32
    %1 = arith.addi %0, %arg1 : i32
    %c0_i32 = arith.constant 0 : i32
    %2 = arith.minsi %1, %c0_i32 : i32
    %c0_i32_0 = arith.constant 0 : i32
    %c0_i32_1 = arith.constant 0 : i32
    return %2, %c0_i32_0 : i32, i32
  }
  func.func @transform_2(%arg0: i32, %arg1: i32) -> (i32, i32) {
    %c0_i32 = arith.constant 0 : i32
    %c0_i32_0 = arith.constant 0 : i32
    return %arg0, %c0_i32 : i32, i32
  }
  func.func @transform_3(%arg0: i32, %arg1: i32) -> (i32, i32) {
    %c0_i32 = arith.constant 0 : i32
    %c0_i32_0 = arith.constant 0 : i32
    return %arg0, %c0_i32 : i32, i32
  }
}

</mosaic_0001>

<llo_original>
// kernel: tpu_custom_call.1
$region0: #{tpu_custom_call.1}
  #allocation0 [shape = 'u32[]', space=smem, size = 0x4, offset = 0x4, fixed_abs, tag = 'smem constant byte address 0x4 - core index']
  #allocation1 [shape = 'u32[144,128]{1,0:T(1,128)}', space=vmem, size = 0x12000, scoped, tag = 'internal scratch']
  %s0 = inlined_call_operand.hbm [shape: f32[16,128], index: 0, kind: input, shape index: {}]
  %s1 = inlined_call_operand.hbm [shape: f32[16,128], index: 1, kind: input, shape index: {}]
  %s2 = inlined_call_operand.hbm [shape: f32[16,128], index: 2, kind: output, shape index: {0}]
  %s3 = inlined_call_operand.hbm [shape: f32[16,128], index: 3, kind: output, shape index: {1}]
  %4 = xla_tuple %s2, %s3
  %s5 = sld [smem:[#allocation0]]
  $region38: #{tpu_custom_call.1} parent=0
    _
  %s7 = ssub.s32 1, %s5
  %s8 = scalar_select 0, %s7, %s5
  $region1: #{tpu_custom_call.1} parent=0
    #allocation2 [shape = 'u8[8192]{0}', space=vmem, size = 0x2000, scoped, tag = 'input window, operand 0, single buffered']
    #allocation3 [shape = 's32[1]{0}', space=sflag, size = 0x4, scoped, tag = 'scoped memory for tpu_custom_call.1']
    #allocation4 [shape = 's32[1]{0}', space=sflag, size = 0x4, scoped, tag = 'scoped memory for tpu_custom_call.1']
    #allocation5 [shape = 'u8[8192]{0}', space=vmem, size = 0x2000, scoped, tag = 'input window, operand 1, single buffered']
    #allocation6 [shape = 's32[1]{0}', space=sflag, size = 0x4, scoped, tag = 'scoped memory for tpu_custom_call.1']
    #allocation7 [shape = 'u8[8192]{0}', space=vmem, size = 0x2000, scoped, tag = 'output window, operand 0, single buffered']
    #allocation8 [shape = 'u8[8192]{0}', space=vmem, size = 0x2000, scoped, tag = 'output window, operand 1, single buffered']
    #allocation9 [shape = 's32[1]{0}', space=sflag, size = 0x4, scoped, tag = 'scoped memory for tpu_custom_call.1']
    %9 = vsyncpa [#allocation3], 0
    %10 = vsyncpa [#allocation6], 0
    %11 = vsyncpa [#allocation4], 0
    %12 = vsyncpa [#allocation9], 0
    // Predicated region
    $region2: #{tpu_custom_call.1} parent=1 // pred_check
      _
    $region3: #{tpu_custom_call.1} parent=1 // pred_check_branch
      %14 = sbr.rel (0) target = $region5
    $region4: #{tpu_custom_call.1} parent=1 // pred_region
      %s15 = sadd.s32 0, 0
      %p16 = scmp.lt.s32.totalorder %s15, 0
      %s17 = scalar_select %p16, %s15, 0
      %s18 = smul.u32 2, %s17
      %s20 = ssub.s32 256, 256
      %21 = vsyncadd [#allocation3], %s20
      %s22 = smul.addr %s18, 128
      %s23 = scalar_lea.hbm %s0, %s22
      %s24 = sshll.u32 [#allocation2], 4
      %s25 = int_to_ptr.vmem [resolvable:$true] %s24
      %30 = dma.hbm_to_vmem [thread:$0]  %s23, 256, %s25, [#allocation3], 128, 128, 8
    $region5: #{tpu_custom_call.1} parent=1 // pred_fallthru
      _
    // Predicated region
    $region6: #{tpu_custom_call.1} parent=1 // pred_check
      _
    $region7: #{tpu_custom_call.1} parent=1 // pred_check_branch
      %32 = sbr.rel (0) target = $region9
    $region8: #{tpu_custom_call.1} parent=1 // pred_region
      %s33 = sadd.s32 0, 0
      %p34 = scmp.lt.s32.totalorder %s33, 0
      %s35 = scalar_select %p34, %s33, 0
      %s36 = smul.u32 2, %s35
      %s38 = ssub.s32 256, 256
      %39 = vsyncadd [#allocation6], %s38
      %s40 = smul.addr %s36, 128
      %s41 = scalar_lea.hbm %s1, %s40
      %s42 = sshll.u32 [#allocation5], 4
      %s43 = int_to_ptr.vmem [resolvable:$true] %s42
      %48 = dma.hbm_to_vmem [thread:$0]  %s41, 256, %s43, [#allocation6], 128, 128, 8
    $region9: #{tpu_custom_call.1} parent=1 // pred_fallthru
      _
    // Predicated region
    $region10: #{tpu_custom_call.1} parent=1 // pred_check
      _
    $region11: #{tpu_custom_call.1} parent=1 // pred_check_branch
      %50 = sbr.rel (0) target = $region13
    $region12: #{tpu_custom_call.1} parent=1 // pred_region
      %51 = dma.done [#allocation3], 256
    $region13: #{tpu_custom_call.1} parent=1 // pred_fallthru
      _
    // Predicated region
    $region14: #{tpu_custom_call.1} parent=1 // pred_check
      _
    $region15: #{tpu_custom_call.1} parent=1 // pred_check_branch
      %53 = sbr.rel (0) target = $region17
    $region16: #{tpu_custom_call.1} parent=1 // pred_region
      %54 = dma.done [#allocation6], 256
    $region17: #{tpu_custom_call.1} parent=1 // pred_fallthru
      _
    %s55 = sadd.s32 0, 0
    %p56 = scmp.lt.s32.totalorder %s55, 0
    %s57 = scalar_select %p56, %s55, 0
    %s58 = smul.u32 2, %s57
    %s59 = sadd.s32 0, 0
    %p60 = scmp.lt.s32.totalorder %s59, 0
    %s61 = scalar_select %p60, %s59, 0
    %s62 = smul.u32 2, %s61
    %p63 = scmp.eq.s32.totalorder 0, 0
    // Predicated region
    $region18: #{tpu_custom_call.1} parent=1 // pred_check
      %p64 = pneg %p63
    $region19: #{tpu_custom_call.1} parent=1 // pred_check_branch
      %66 = sbr.rel (%p64) target = $region21
    $region20: #{tpu_custom_call.1} parent=1 // pred_region
      %67 = vst [vmem:[#allocation7] sm:$0xff] 0.0
      %68 = vst [vmem:[#allocation7 + $0x8] sm:$0xff] 0.0
      %69 = vst [vmem:[#allocation8] sm:$0xff] 0.0
      %70 = vst [vmem:[#allocation8 + $0x8] sm:$0xff] 0.0
    $region21: #{tpu_custom_call.1} parent=1 // pred_fallthru
      _
    %v71 = vld [vmem:[#allocation2] sm:$0xff]
    %v72 = vld [vmem:[#allocation2 + $0x8] sm:$0xff]
    %v73 = vld [vmem:[#allocation5] sm:$0xff]
    %v74 = vld [vmem:[#allocation5 + $0x8] sm:$0xff]
    %vm75 = vcmp.eq.f32.partialorder %v73, 1.0
    %vm76 = vcmp.eq.f32.partialorder %v74, 1.0
    %v77 = vsel %vm75, 1, 0
    %v78 = vsel %vm76, 1, 0
    %v79 = vcvt.s32.f32 %v77
    %v80 = vcvt.s32.f32 %v78
    %vm81 = vcmp.lt.f32.partialorder %v73, 1.0
    %vm82 = vcmp.lt.f32.partialorder %v74, 1.0
    %v83 = vsel %vm81, 1, 0
    %v84 = vsel %vm82, 1, 0
    %v85 = vcvt.s32.f32 %v83
    %v86 = vcvt.s32.f32 %v84
    %v87 = vsub.f32 1.0, %v71
    %v88 = vsub.f32 1.0, %v72
    %v89 = vsub.f32 1.0, %v73
    %v90 = vsub.f32 1.0, %v74
    %v91 = vmul.f32 %v89, %v89
    %v92 = vmul.f32 %v90, %v90
    %v93 = vmul.f32 %v91, %v91
    %v94 = vmul.f32 %v92, %v92
    %v95 = vsel %vm75, %v71, %v87
    %v96 = vsel %vm76, %v72, %v88
    %v97 = vlog2.pop %v95
    %v98 = vmul.f32 %v97, 0.6931472
    %v99 = vlog2.pop %v96
    %v100 = vmul.f32 %v99, 0.6931472
    %v101 = vmul.f32 %v79, %v87
    %v102 = vmul.f32 %v80, %v88
    %v103 = vmul.f32 %v101, %v87
    %v104 = vmul.f32 %v102, %v88
    %v105 = vmul.f32 %v85, %v93
    %v106 = vmul.f32 %v86, %v94
    %v107 = vmul.f32 %v105, %v71
    %v108 = vmul.f32 %v106, %v72
    %v109 = vmul.f32 %v107, %v71
    %v110 = vmul.f32 %v108, %v72
    %v111 = vadd.f32 %v103, %v109
    %v112 = vadd.f32 %v104, %v110
    %v113 = vld [vmem:[#allocation7] sm:$0xff]
    %v114 = vld [vmem:[#allocation7 + $0x8] sm:$0xff]
    %v115 = vmul.f32 %v98, %v111
    %v116 = vmul.f32 %v100, %v112
    %v117 = vadd.f32 %v113, %v115
    %v118 = vadd.f32 %v114, %v116
    %119 = vst [vmem:[#allocation7] sm:$0xff] %v117
    %120 = vst [vmem:[#allocation7 + $0x8] sm:$0xff] %v118
    %v121 = vld [vmem:[#allocation8] sm:$0xff]
    %v122 = vld [vmem:[#allocation8 + $0x8] sm:$0xff]
    %v123 = vadd.f32 %v121, %v79
    %v124 = vadd.f32 %v122, %v80
    %125 = vst [vmem:[#allocation8] sm:$0xff] %v123
    %126 = vst [vmem:[#allocation8 + $0x8] sm:$0xff] %v124
    // Predicated region
    $region22: #{tpu_custom_call.1} parent=1 // pred_check
      _
    $region23: #{tpu_custom_call.1} parent=1 // pred_check_branch
      %128 = sbr.rel (0) target = $region25
    $region24: #{tpu_custom_call.1} parent=1 // pred_region
      %s130 = ssub.s32 256, 256
      %131 = vsyncadd [#allocation4], %s130
      %s132 = sshll.u32 [#allocation7], 4
      %s133 = int_to_ptr.vmem [resolvable:$true] %s132
      %138 = dma.vmem_to_hbm [thread:$0]  %s133, 256, %s2, [#allocation4], 128, 128, 8
    $region25: #{tpu_custom_call.1} parent=1 // pred_fallthru
      _
    // Predicated region
    $region26: #{tpu_custom_call.1} parent=1 // pred_check
      _
    $region27: #{tpu_custom_call.1} parent=1 // pred_check_branch
      %140 = sbr.rel (0) target = $region29
    $region28: #{tpu_custom_call.1} parent=1 // pred_region
      %s142 = ssub.s32 256, 256
      %143 = vsyncadd [#allocation9], %s142
      %s144 = sshll.u32 [#allocation8], 4
      %s145 = int_to_ptr.vmem [resolvable:$true] %s144
      %150 = dma.vmem_to_hbm [thread:$0]  %s145, 256, %s3, [#allocation9], 128, 128, 8
    $region29: #{tpu_custom_call.1} parent=1 // pred_fallthru
      _
    // Predicated region
    $region30: #{tpu_custom_call.1} parent=1 // pred_check
      _
    $region31: #{tpu_custom_call.1} parent=1 // pred_check_branch
      %152 = sbr.rel (0) target = $region33
    $region32: #{tpu_custom_call.1} parent=1 // pred_region
      %153 = dma.done [#allocation4], 256
    $region33: #{tpu_custom_call.1} parent=1 // pred_fallthru
      _
    // Predicated region
    $region34: #{tpu_custom_call.1} parent=1 // pred_check
      _
    $region35: #{tpu_custom_call.1} parent=1 // pred_check_branch
      %155 = sbr.rel (0) target = $region37
    $region36: #{tpu_custom_call.1} parent=1 // pred_region
      %156 = dma.done [#allocation9], 256
    $region37: #{tpu_custom_call.1} parent=1 // pred_fallthru
      _
    %157 = vsyncpa [#allocation3], 1
    %158 = vsyncpa [#allocation6], 1
    %159 = vsyncpa [#allocation4], 1
    %160 = vsyncpa [#allocation9], 1

</llo_original>
